<compile_context>
chip_gen: v7x
topology: tpu7x:2x2x1
jax: 0.10.0
libtpu: 0.0.40
codegen_flags: <defaults>
</compile_context>

<pallas_src>
import math

import jax
import jax.numpy as jnp
from jax.experimental import pallas as pl
from jax.experimental.pallas import tpu as pltpu


def _largest_divisor_leq(n, cap):
    """Largest divisor of n that is <= cap (cap >= 1)."""
    best = 1
    i = 1
    while i * i <= n:
        if n % i == 0:
            for c in (i, n // i):
                if best < c <= cap:
                    best = c
        i += 1
    return best


def _choose_lane_tile(hw_p, rb, itemsize, target_bytes):
    """Pick a lane tile tm (multiple of 128) so rb*tm*itemsize ~= target_bytes.

    hw_p is already a multiple of 128.  Returns (tm, hw_p') where tm divides
    hw_p' exactly (hw_p' may be padded a little further for pathological
    extents with no useful divisors)."""
    target_lanes = max(128, (int(target_bytes) // (rb * itemsize)) // 128 * 128)
    if hw_p <= target_lanes:
        return hw_p, hw_p                      # whole lane dim in one block
    d = _largest_divisor_leq(hw_p // 128, target_lanes // 128)
    tm = 128 * d
    # Pathological extents (no decent divisor): pad the lane dim a bit more so
    # a healthy tile divides it exactly instead of degrading to tiny blocks.
    if tm * rb * itemsize < (256 << 10):
        tm = min(target_lanes, 8192)
        hw_p = ((hw_p + tm - 1) // tm) * tm
    return tm, hw_p


def _make_kernel(cw, n_chunks, unroll):
    """Kernel over one (RB, tm) lane-dense block; cw/n_chunks/unroll static."""

    def kernel(x_ref, w1_ref, b1_ref, w2_ref, b2_ref, o_ref):
        ga = b1_ref.shape[0]                   # G * C_ad
        rb = b2_ref.shape[0]                   # G * C
        w1 = w1_ref[...]                       # (GA, RB) block-diagonal conv1
        w2 = w2_ref[...]                       # (RB, GA) block-diagonal conv2
        # Hoisted bias broadcasts: emitted once per block, not per chunk.
        b1w = jnp.broadcast_to(b1_ref[...].astype(jnp.float32), (ga, cw))
        b2w = jnp.broadcast_to(b2_ref[...].astype(jnp.float32), (rb, cw))

        def process(off):
            xc = x_ref[:, pl.ds(off, cw)]      # (RB, CW), input dtype
            h = jnp.dot(w1, xc, preferred_element_type=jnp.float32) + b1w
            h = jnp.maximum(h, 0.0)            # (GA, CW), f32
            y = jnp.dot(w2, h.astype(w2.dtype),
                        preferred_element_type=jnp.float32) + b2w
            # Residual add in f32, single cast to the output dtype.
            o_ref[:, pl.ds(off, cw)] = (
                xc.astype(jnp.float32) + y).astype(o_ref.dtype)

        if n_chunks == 1:
            process(0)
        else:
            def body(j, carry):
                process(pl.multiple_of(j * cw, cw))
                return carry
            jax.lax.fori_loop(0, n_chunks, body, 0, unroll=unroll)

    return kernel


def adapter_forward(x_nchw, w1, b1, w2, b2, *, target_block_bytes=2 << 20):
    """x_nchw: (N, C, H, W)
    w1: (C_ad, C)  -- Conv2d(C, C_ad, 1).weight squeezed
    b1: (C_ad,)
    w2: (C, C_ad)  -- Conv2d(C_ad, C, 1).weight squeezed
    b2: (C,)
    Returns (N, C, H, W)."""
    N, C, H, W = x_nchw.shape
    C_ad = w1.shape[0]
    HW = H * W
    itemsize = jnp.dtype(x_nchw.dtype).itemsize

    # ---- row grouping: pack G images so one block fills all 8 sublanes ----
    base = math.lcm(8, C) // C
    if N % base == 0:
        G, N_p = base, N
    elif N < base:
        G, N_p = N, N                          # full-row block (legal: = dim)
    else:
        G, N_p = base, ((N + base - 1) // base) * base   # pad a few images
    RB = G * C                                 # x / out rows per block
    GA = G * C_ad                              # hidden rows per block

    # ---- lane tiling: bytes-targeted blocks of lane width tm ----
    HW_p = ((HW + 127) // 128) * 128
    tm, HW_p = _choose_lane_tile(HW_p, RB, itemsize, target_block_bytes)

    # ---- pad (rows, lanes); both pads are usually no-ops ----
    R, R_p = N * C, N_p * C
    x2d = x_nchw.reshape(R, HW)
    if R_p != R or HW_p != HW:
        x2d = jnp.pad(x2d, ((0, R_p - R), (0, HW_p - HW)))

    # ---- block-diagonal weights / tiled biases (tiny, built once) ----
    w1b = jnp.kron(jnp.eye(G, dtype=w1.dtype), w1)      # (GA, RB)
    w2b = jnp.kron(jnp.eye(G, dtype=w2.dtype), w2)      # (RB, GA)
    b1b = jnp.tile(b1, G).reshape(GA, 1)
    b2b = jnp.tile(b2, G).reshape(RB, 1)

    # ---- compute chunk: keep the f32 hidden (GA, CW) within ~32 vregs ----
    cw_budget = max(128, ((128 * 1024) // (GA * 4)) // 128 * 128)
    CW = 128 * _largest_divisor_leq(tm // 128, max(1, cw_budget // 128))
    n_chunks = tm // CW
    unroll = 1
    while unroll < 8 and n_chunks % (2 * unroll) == 0:
        unroll *= 2

    grid = (R_p // RB, HW_p // tm)
    block_bytes = RB * tm * itemsize
    # Double-buffered in + out blocks plus weights and headroom.
    vmem_limit = max(32 << 20, 4 * block_bytes + (8 << 20))

    out2d = pl.pallas_call(
        _make_kernel(CW, n_chunks, unroll),
        out_shape=jax.ShapeDtypeStruct((R_p, HW_p), x_nchw.dtype),
        grid_spec=pltpu.PrefetchScalarGridSpec(
            num_scalar_prefetch=0,
            grid=grid,
            in_specs=[
                pl.BlockSpec((RB, tm), lambda r, l: (r, l)),    # x block
                pl.BlockSpec((GA, RB), lambda r, l: (0, 0)),    # W1' block-diag
                pl.BlockSpec((GA, 1), lambda r, l: (0, 0)),     # b1 tiled
                pl.BlockSpec((RB, GA), lambda r, l: (0, 0)),    # W2' block-diag
                pl.BlockSpec((RB, 1), lambda r, l: (0, 0)),     # b2 tiled
            ],
            out_specs=pl.BlockSpec((RB, tm), lambda r, l: (r, l)),
        ),
        compiler_params=pltpu.CompilerParams(
            dimension_semantics=("parallel", "parallel"),
            vmem_limit_bytes=int(vmem_limit),
        ),
    )(x2d, w1b, b1b, w2b, b2b)

    return out2d[:R, :HW].reshape(N, C, H, W)


def _reference(x_nchw, w1, b1, w2, b2):
    # Pure-JAX reference of the same math (weights in (C_out, C_in) conv form).
    h = jnp.einsum("oc,nchw->nohw", w1, x_nchw) + b1[None, :, None, None]
    h = jnp.maximum(h, 0.0)
    y = jnp.einsum("co,nohw->nchw", w2, h) + b2[None, :, None, None]
    return x_nchw + y


if __name__ == "__main__":
    key = jax.random.PRNGKey(0)
    C_ad = 64  # adapter_channels

    # (N, C, H, W): main shape, chunked-loop shape, padded-batch/lane shape,
    # small-batch full-row-block shape.
    cases = [
        (2, 4, 16, 16),
        (2, 4, 64, 64),
        (3, 4, 10, 10),
        (2, 3, 12, 12),
    ]

    for idx, (N, C, H, W) in enumerate(cases):
        key, k_x, k_w1, k_b1, k_w2, k_b2 = jax.random.split(key, 6)
        x = jax.random.normal(k_x, (N, C, H, W), dtype=jnp.float32)
        # Conv2d(C, C_ad, 1).weight (C_ad, C, 1, 1) -> squeezed (C_ad, C)
        w1 = jax.random.normal(k_w1, (C_ad, C), dtype=jnp.float32) * 0.1
        b1 = jax.random.normal(k_b1, (C_ad,), dtype=jnp.float32) * 0.1
        # Conv2d(C_ad, C, 1).weight (C, C_ad, 1, 1) -> squeezed (C, C_ad)
        w2 = jax.random.normal(k_w2, (C, C_ad), dtype=jnp.float32) * 0.1
        b2 = jax.random.normal(k_b2, (C,), dtype=jnp.float32) * 0.1

        out = jax.block_until_ready(adapter_forward(x, w1, b1, w2, b2))
        ref = _reference(x, w1, b1, w2, b2)
        assert out.shape == (N, C, H, W), f"case {idx}: bad shape {out.shape}"
        assert bool(jnp.allclose(out, ref, atol=1e-4, rtol=1e-4)), \
            f"case {idx}: mismatch (max err {float(jnp.abs(out - ref).max())})"

    print("KERNEL_OK")
</pallas_src>

<mosaic_0001>
module attributes {stable_mosaic.version = 11 : i64} {
  func.func @kernel(%arg0: i32, %arg1: i32, %arg2: memref<8x256xf32, #tpu.memory_space<vmem>>, %arg3: memref<128x8xf32, #tpu.memory_space<vmem>>, %arg4: memref<128x1xf32, #tpu.memory_space<vmem>>, %arg5: memref<8x128xf32, #tpu.memory_space<vmem>>, %arg6: memref<8x1xf32, #tpu.memory_space<vmem>>, %arg7: memref<8x256xf32, #tpu.memory_space<vmem>>) attributes {dimension_semantics = [#tpu.dimension_semantics<parallel>, #tpu.dimension_semantics<parallel>], iteration_bounds = array<i64: 1, 1>, scalar_prefetch = 0 : i64, scratch_operands = 0 : i64, tpu.core_type = #tpu.core_type<tc>, window_params = [{transform_indices = @transform_0, window_bounds = array<i64: 8, 256>}, {pipeline_mode = #tpu.pipeline_mode<synchronous>, transform_indices = @transform_1, window_bounds = array<i64: 128, 8>}, {pipeline_mode = #tpu.pipeline_mode<synchronous>, transform_indices = @transform_2, window_bounds = array<i64: 128, 1>}, {pipeline_mode = #tpu.pipeline_mode<synchronous>, transform_indices = @transform_3, window_bounds = array<i64: 8, 128>}, {pipeline_mode = #tpu.pipeline_mode<synchronous>, transform_indices = @transform_4, window_bounds = array<i64: 8, 1>}, {transform_indices = @transform_5, window_bounds = array<i64: 8, 256>}]} {
    %c0 = arith.constant 0 : index
    %c0_0 = arith.constant 0 : index
    %0 = vector.load %arg3[%c0, %c0_0] : memref<128x8xf32, #tpu.memory_space<vmem>>, vector<128x8xf32>
    %c0_1 = arith.constant 0 : index
    %c0_2 = arith.constant 0 : index
    %1 = vector.load %arg5[%c0_1, %c0_2] : memref<8x128xf32, #tpu.memory_space<vmem>>, vector<8x128xf32>
    %c0_3 = arith.constant 0 : index
    %c0_4 = arith.constant 0 : index
    %2 = vector.load %arg4[%c0_3, %c0_4] : memref<128x1xf32, #tpu.memory_space<vmem>>, vector<128x1xf32>
    %3 = vector.shape_cast %2 : vector<128x1xf32> to vector<128x1xf32>
    %4 = vector.broadcast %3 : vector<128x1xf32> to vector<128x256xf32>
    %c0_5 = arith.constant 0 : index
    %c0_6 = arith.constant 0 : index
    %5 = vector.load %arg6[%c0_5, %c0_6] : memref<8x1xf32, #tpu.memory_space<vmem>>, vector<8x1xf32>
    %6 = vector.shape_cast %5 : vector<8x1xf32> to vector<8x1xf32>
    %7 = vector.broadcast %6 : vector<8x1xf32> to vector<8x256xf32>
    %c0_7 = arith.constant 0 : index
    %c0_8 = arith.constant 0 : index
    %8 = vector.load %arg2[%c0_7, %c0_8] : memref<8x256xf32, #tpu.memory_space<vmem>>, vector<8x256xf32>
    %cst = arith.constant dense<0.000000e+00> : vector<128x256xf32>
    %9 = tpu.matmul %0, %8, %cst {dimension_numbers = #tpu.dot_dimension_numbers<[1], [0], [0], [1], [0, 0, 1, 1], [], []>} : vector<128x8xf32>, vector<8x256xf32>, vector<128x256xf32> -> vector<128x256xf32>
    %10 = arith.addf %9, %4 : vector<128x256xf32>
    %cst_9 = arith.constant 0.000000e+00 : f32
    %11 = vector.broadcast %cst_9 : f32 to vector<128x256xf32>
    %12 = arith.maximumf %10, %11 : vector<128x256xf32>
    %cst_10 = arith.constant dense<0.000000e+00> : vector<8x256xf32>
    %13 = tpu.matmul %1, %12, %cst_10 {dimension_numbers = #tpu.dot_dimension_numbers<[1], [0], [0], [1], [0, 0, 1, 1], [], []>} : vector<8x128xf32>, vector<128x256xf32>, vector<8x256xf32> -> vector<8x256xf32>
    %14 = arith.addf %13, %7 : vector<8x256xf32>
    %15 = arith.addf %8, %14 : vector<8x256xf32>
    %c0_11 = arith.constant 0 : index
    %c0_12 = arith.constant 0 : index
    %16 = vector.load %arg7[%c0_11, %c0_12] : memref<8x256xf32, #tpu.memory_space<vmem>>, vector<8x256xf32>
    tpu.vector_store %arg7[%c0_11, %c0_12], %15 {strides = array<i32>} : memref<8x256xf32, #tpu.memory_space<vmem>>, vector<8x256xf32>,
    return
  }
  func.func @transform_0(%arg0: i32, %arg1: i32) -> (i32, i32) {
    %c0_i32 = arith.constant 0 : i32
    return %arg0, %arg1 : i32, i32
  }
  func.func @transform_1(%arg0: i32, %arg1: i32) -> (i32, i32) {
    %c0_i32 = arith.constant 0 : i32
    %c0_i32_0 = arith.constant 0 : i32
    %c0_i32_1 = arith.constant 0 : i32
    return %c0_i32, %c0_i32_0 : i32, i32
  }
  func.func @transform_2(%arg0: i32, %arg1: i32) -> (i32, i32) {
    %c0_i32 = arith.constant 0 : i32
    %c0_i32_0 = arith.constant 0 : i32
    %c0_i32_1 = arith.constant 0 : i32
    return %c0_i32, %c0_i32_0 : i32, i32
  }
  func.func @transform_3(%arg0: i32, %arg1: i32) -> (i32, i32) {
    %c0_i32 = arith.constant 0 : i32
    %c0_i32_0 = arith.constant 0 : i32
    %c0_i32_1 = arith.constant 0 : i32
    return %c0_i32, %c0_i32_0 : i32, i32
  }
  func.func @transform_4(%arg0: i32, %arg1: i32) -> (i32, i32) {
    %c0_i32 = arith.constant 0 : i32
    %c0_i32_0 = arith.constant 0 : i32
    %c0_i32_1 = arith.constant 0 : i32
    return %c0_i32, %c0_i32_0 : i32, i32
  }
  func.func @transform_5(%arg0: i32, %arg1: i32) -> (i32, i32) {
    %c0_i32 = arith.constant 0 : i32
    return %arg0, %arg1 : i32, i32
  }
}

</mosaic_0001>

<llo_original>
// kernel: tpu_custom_call.1
$region0: #{tpu_custom_call.1}
  #allocation0 [shape = 'u32[]', space=smem, size = 0x4, offset = 0x4, fixed_abs, tag = 'smem constant byte address 0x4 - core index']
  #allocation1 [shape = 'u32[144,128]{1,0:T(1,128)}', space=vmem, size = 0x12000, scoped, tag = 'internal scratch']
  %s0 = inlined_call_operand.vmem [shape: f32[8,256], index: 0, kind: input, shape index: {}]
  %s1 = inlined_call_operand.vmem [shape: f32[128,8], index: 1, kind: input, shape index: {}]
  %s2 = inlined_call_operand.vmem [shape: f32[128,1], index: 2, kind: input, shape index: {}]
  %s3 = inlined_call_operand.vmem [shape: f32[8,128], index: 3, kind: input, shape index: {}]
  %s4 = inlined_call_operand.vmem [shape: f32[8,1], index: 4, kind: input, shape index: {}]
  %s5 = inlined_call_operand.hbm [shape: f32[8,256], index: 5, kind: output, shape index: {}]
  %s6 = sld [smem:[#allocation0]]
  $region30: #{tpu_custom_call.1} parent=0
    _
  %s8 = ssub.s32 1, %s6
  %s9 = scalar_select 0, %s8, %s6
  $region1: #{tpu_custom_call.1} parent=0
    #allocation2 [shape = 'u8[8192]{0}', space=vmem, size = 0x2000, scoped, tag = 'output window, operand 0, single buffered']
    #allocation3 [shape = 's32[1]{0}', space=sflag, size = 0x4, scoped, tag = 'scoped memory for tpu_custom_call.1']
    %10 = vsyncpa [#allocation3], 0
    // Predicated region
    $region2: #{tpu_custom_call.1} parent=1 // pred_check
      _
    $region3: #{tpu_custom_call.1} parent=1 // pred_check_branch
      %12 = sbr.rel (0) target = $region5
    $region4: #{tpu_custom_call.1} parent=1 // pred_region
      _
    $region5: #{tpu_custom_call.1} parent=1 // pred_fallthru
      _
    // Predicated region
    $region6: #{tpu_custom_call.1} parent=1 // pred_check
      _
    $region7: #{tpu_custom_call.1} parent=1 // pred_check_branch
      %14 = sbr.rel (0) target = $region9
    $region8: #{tpu_custom_call.1} parent=1 // pred_region
      _
    $region9: #{tpu_custom_call.1} parent=1 // pred_fallthru
      _
    // Predicated region
    $region10: #{tpu_custom_call.1} parent=1 // pred_check
      _
    $region11: #{tpu_custom_call.1} parent=1 // pred_check_branch
      %16 = sbr.rel (0) target = $region13
    $region12: #{tpu_custom_call.1} parent=1 // pred_region
      _
    $region13: #{tpu_custom_call.1} parent=1 // pred_fallthru
      _
    // Predicated region
    $region14: #{tpu_custom_call.1} parent=1 // pred_check
      _
    $region15: #{tpu_custom_call.1} parent=1 // pred_check_branch
      %18 = sbr.rel (0) target = $region17
    $region16: #{tpu_custom_call.1} parent=1 // pred_region
      _
    $region17: #{tpu_custom_call.1} parent=1 // pred_fallthru
      _
    // Predicated region
    $region18: #{tpu_custom_call.1} parent=1 // pred_check
      _
    $region19: #{tpu_custom_call.1} parent=1 // pred_check_branch
      %20 = sbr.rel (0) target = $region21
    $region20: #{tpu_custom_call.1} parent=1 // pred_region
      _
    $region21: #{tpu_custom_call.1} parent=1 // pred_fallthru
      _
    %v21 = vld [vmem:[%s1] sm:$0xff]
    %v22 = vld [vmem:[%s1 + $0x8] sm:$0xff]
    %v23 = vld [vmem:[%s1 + $0x10] sm:$0xff]
    %v24 = vld [vmem:[%s1 + $0x18] sm:$0xff]
    %v25 = vld [vmem:[%s1 + $0x20] sm:$0xff]
    %v26 = vld [vmem:[%s1 + $0x28] sm:$0xff]
    %v27 = vld [vmem:[%s1 + $0x30] sm:$0xff]
    %v28 = vld [vmem:[%s1 + $0x38] sm:$0xff]
    %v29 = vld [vmem:[%s1 + $0x40] sm:$0xff]
    %v30 = vld [vmem:[%s1 + $0x48] sm:$0xff]
    %v31 = vld [vmem:[%s1 + $0x50] sm:$0xff]
    %v32 = vld [vmem:[%s1 + $0x58] sm:$0xff]
    %v33 = vld [vmem:[%s1 + $0x60] sm:$0xff]
    %v34 = vld [vmem:[%s1 + $0x68] sm:$0xff]
    %v35 = vld [vmem:[%s1 + $0x70] sm:$0xff]
    %v36 = vld [vmem:[%s1 + $0x78] sm:$0xff]
    %v37 = vld [vmem:[%s3] sm:$0xff]
    %v38 = vld [vmem:[%s2] sm:$0xff]
    %v39 = vld [vmem:[%s2 + $0x8] sm:$0xff]
    %v40 = vld [vmem:[%s2 + $0x10] sm:$0xff]
    %v41 = vld [vmem:[%s2 + $0x18] sm:$0xff]
    %v42 = vld [vmem:[%s2 + $0x20] sm:$0xff]
    %v43 = vld [vmem:[%s2 + $0x28] sm:$0xff]
    %v44 = vld [vmem:[%s2 + $0x30] sm:$0xff]
    %v45 = vld [vmem:[%s2 + $0x38] sm:$0xff]
    %v46 = vld [vmem:[%s2 + $0x40] sm:$0xff]
    %v47 = vld [vmem:[%s2 + $0x48] sm:$0xff]
    %v48 = vld [vmem:[%s2 + $0x50] sm:$0xff]
    %v49 = vld [vmem:[%s2 + $0x58] sm:$0xff]
    %v50 = vld [vmem:[%s2 + $0x60] sm:$0xff]
    %v51 = vld [vmem:[%s2 + $0x68] sm:$0xff]
    %v52 = vld [vmem:[%s2 + $0x70] sm:$0xff]
    %v53 = vld [vmem:[%s2 + $0x78] sm:$0xff]
    %55 = vset.pattern.permute.xlu0 0
    %56 = vperm.xlu0 %55, %v38
    %v57 = vpop.permute.xlu0 %56
    %60 = vset.pattern.permute.xlu0 0
    %61 = vperm.xlu0 %60, %v39
    %v62 = vpop.permute.xlu0 %61
    %65 = vset.pattern.permute.xlu0 0
    %66 = vperm.xlu0 %65, %v40
    %v67 = vpop.permute.xlu0 %66
    %70 = vset.pattern.permute.xlu0 0
    %71 = vperm.xlu0 %70, %v41
    %v72 = vpop.permute.xlu0 %71
    %75 = vset.pattern.permute.xlu0 0
    %76 = vperm.xlu0 %75, %v42
    %v77 = vpop.permute.xlu0 %76
    %80 = vset.pattern.permute.xlu0 0
    %81 = vperm.xlu0 %80, %v43
    %v82 = vpop.permute.xlu0 %81
    %85 = vset.pattern.permute.xlu0 0
    %86 = vperm.xlu0 %85, %v44
    %v87 = vpop.permute.xlu0 %86
    %90 = vset.pattern.permute.xlu0 0
    %91 = vperm.xlu0 %90, %v45
    %v92 = vpop.permute.xlu0 %91
    %95 = vset.pattern.permute.xlu0 0
    %96 = vperm.xlu0 %95, %v46
    %v97 = vpop.permute.xlu0 %96
    %100 = vset.pattern.permute.xlu0 0
    %101 = vperm.xlu0 %100, %v47
    %v102 = vpop.permute.xlu0 %101
    %105 = vset.pattern.permute.xlu0 0
    %106 = vperm.xlu0 %105, %v48
    %v107 = vpop.permute.xlu0 %106
    %110 = vset.pattern.permute.xlu0 0
    %111 = vperm.xlu0 %110, %v49
    %v112 = vpop.permute.xlu0 %111
    %115 = vset.pattern.permute.xlu0 0
    %116 = vperm.xlu0 %115, %v50
    %v117 = vpop.permute.xlu0 %116
    %120 = vset.pattern.permute.xlu0 0
    %121 = vperm.xlu0 %120, %v51
    %v122 = vpop.permute.xlu0 %121
    %125 = vset.pattern.permute.xlu0 0
    %126 = vperm.xlu0 %125, %v52
    %v127 = vpop.permute.xlu0 %126
    %130 = vset.pattern.permute.xlu0 0
    %131 = vperm.xlu0 %130, %v53
    %v132 = vpop.permute.xlu0 %131
    %v134 = vld [vmem:[%s4] sm:$0xff]
    %136 = vset.pattern.permute.xlu0 0
    %137 = vperm.xlu0 %136, %v134
    %v138 = vpop.permute.xlu0 %137
    %v140 = vld [vmem:[%s0] sm:$0xff]
    %v141 = vld [vmem:[%s0 + $0x8] sm:$0xff]
    %vm142 = vcmask 64512
    %v144 = vsel %vm142, %v21, 0
    %v147 = vsel %vm142, %v22, 0
    %v150 = vsel %vm142, %v23, 0
    %v153 = vsel %vm142, %v24, 0
    %v156 = vsel %vm142, %v25, 0
    %v159 = vsel %vm142, %v26, 0
    %v162 = vsel %vm142, %v27, 0
    %v165 = vsel %vm142, %v28, 0
    %v168 = vsel %vm142, %v29, 0
    %v171 = vsel %vm142, %v30, 0
    %v174 = vsel %vm142, %v31, 0
    %v177 = vsel %vm142, %v32, 0
    %v180 = vsel %vm142, %v33, 0
    %v183 = vsel %vm142, %v34, 0
    %v186 = vsel %vm142, %v35, 0
    %v189 = vsel %vm142, %v36, 0
    %191 = vmatprep.subr.mxu0 %v141
    %192 = vmatpush1.msra.mxu0 %v140
    %193 = vmatprep.subr.mxu0 0.0
    %194 = vmatpush1.msra.mxu0 0.0
    %195 = vmatprep.subr.mxu0 0.0
    %196 = vmatpush1.msra.mxu0 0.0
    %197 = vmatprep.subr.mxu0 0.0
    %198 = vmatpush1.msra.mxu0 0.0
    %199 = vmatprep.subr.mxu0 0.0
    %200 = vmatpush1.msra.mxu0 0.0
    %201 = vmatprep.subr.mxu0 0.0
    %202 = vmatpush1.msra.mxu0 0.0
    %203 = vmatprep.subr.mxu0 0.0
    %204 = vmatpush1.msra.mxu0 0.0
    %205 = vmatprep.subr.mxu0 0.0
    %206 = vmatpush1.msra.mxu0 0.0
    %207 = vmatprep.subr.mxu0 0.0
    %208 = vmatpush1.msra.mxu0 0.0
    %209 = vmatprep.subr.mxu0 0.0
    %210 = vmatpush1.msra.mxu0 0.0
    %211 = vmatprep.subr.mxu0 0.0
    %212 = vmatpush1.msra.mxu0 0.0
    %213 = vmatprep.subr.mxu0 0.0
    %214 = vmatpush1.msra.mxu0 0.0
    %215 = vmatprep.subr.mxu0 0.0
    %216 = vmatpush1.msra.mxu0 0.0
    %217 = vmatprep.subr.mxu0 0.0
    %218 = vmatpush1.msra.mxu0 0.0
    %219 = vmatprep.subr.mxu0 0.0
    %220 = vmatpush1.msra.mxu0 0.0
    %221 = vmatprep.subr.mxu0 0.0
    %222 = vmatpush1.msra.mxu0 0.0
    %223 = vmatprep.subr.mxu0 0.0
    %224 = vmatpush1.msra.mxu0 0.0
    %225 = vmatprep.subr.mxu0 0.0
    %226 = vmatpush1.msra.mxu0 0.0
    %227 = vmatprep.subr.mxu0 0.0
    %228 = vmatpush1.msra.mxu0 0.0
    %229 = vmatprep.subr.mxu0 0.0
    %230 = vmatpush1.msra.mxu0 0.0
    %231 = vmatprep.subr.mxu0 0.0
    %232 = vmatpush1.msra.mxu0 0.0
    %233 = vmatprep.subr.mxu0 0.0
    %234 = vmatpush1.msra.mxu0 0.0
    %235 = vmatprep.subr.mxu0 0.0
    %236 = vmatpush1.msra.mxu0 0.0
    %237 = vmatprep.subr.mxu0 0.0
    %238 = vmatpush1.msra.mxu0 0.0
    %239 = vmatprep.subr.mxu0 0.0
    %240 = vmatpush1.msra.mxu0 0.0
    %241 = vmatprep.subr.mxu0 0.0
    %242 = vmatpush1.msra.mxu0 0.0
    %243 = vmatprep.subr.mxu0 0.0
    %244 = vmatpush1.msra.mxu0 0.0
    %245 = vmatprep.subr.mxu0 0.0
    %246 = vmatpush1.msra.mxu0 0.0
    %247 = vmatprep.subr.mxu0 0.0
    %248 = vmatpush1.msra.mxu0 0.0
    %249 = vmatprep.subr.mxu0 0.0
    %250 = vmatpush1.msra.mxu0 0.0
    %251 = vmatprep.subr.mxu0 0.0
    %252 = vmatpush1.msra.mxu0 0.0
    %253 = vmatprep.subr.mxu0 0.0
    %254 = vmatpush1.msra.mxu0 0.0
    %255 = vmatprep.mubr.f32.mxu0 0.0
    %256 = vmatmul.mubr.f32.gmra.mrb[0].mxu0 %v144
    %v257 = vpop.f32.mrb[0].mxu0
    %v258 = vadd.f32 %v57, %v257
    %v259 = vpop.f32.mrb[0].mxu0
    %v260 = vadd.f32 %v57, %v259
    %261 = vmatprep.mubr.f32.mxu0 0.0
    %262 = vmatmul.mubr.f32.gmra.mrb[0].mxu0 %v147
    %v263 = vpop.f32.mrb[0].mxu0
    %v264 = vadd.f32 %v62, %v263
    %v265 = vpop.f32.mrb[0].mxu0
    %v266 = vadd.f32 %v62, %v265
    %267 = vmatprep.mubr.f32.mxu0 0.0
    %268 = vmatmul.mubr.f32.gmra.mrb[0].mxu0 %v150
    %v269 = vpop.f32.mrb[0].mxu0
    %v270 = vadd.f32 %v67, %v269
    %v271 = vpop.f32.mrb[0].mxu0
    %v272 = vadd.f32 %v67, %v271
    %273 = vmatprep.mubr.f32.mxu0 0.0
    %274 = vmatmul.mubr.f32.gmra.mrb[0].mxu0 %v153
    %v275 = vpop.f32.mrb[0].mxu0
    %v276 = vadd.f32 %v72, %v275
    %v277 = vpop.f32.mrb[0].mxu0
    %v278 = vadd.f32 %v72, %v277
    %279 = vmatprep.mubr.f32.mxu0 0.0
    %280 = vmatmul.mubr.f32.gmra.mrb[0].mxu0 %v156
    %v281 = vpop.f32.mrb[0].mxu0
    %v282 = vadd.f32 %v77, %v281
    %v283 = vpop.f32.mrb[0].mxu0
    %v284 = vadd.f32 %v77, %v283
    %285 = vmatprep.mubr.f32.mxu0 0.0
    %286 = vmatmul.mubr.f32.gmra.mrb[0].mxu0 %v159
    %v287 = vpop.f32.mrb[0].mxu0
    %v288 = vadd.f32 %v82, %v287
    %v289 = vpop.f32.mrb[0].mxu0
    %v290 = vadd.f32 %v82, %v289
    %291 = vmatprep.mubr.f32.mxu0 0.0
    %292 = vmatmul.mubr.f32.gmra.mrb[0].mxu0 %v162
    %v293 = vpop.f32.mrb[0].mxu0
    %v294 = vadd.f32 %v87, %v293
    %v295 = vpop.f32.mrb[0].mxu0
    %v296 = vadd.f32 %v87, %v295
    %297 = vmatprep.mubr.f32.mxu0 0.0
    %298 = vmatmul.mubr.f32.gmra.mrb[0].mxu0 %v165
    %v299 = vpop.f32.mrb[0].mxu0
    %v300 = vadd.f32 %v92, %v299
    %v301 = vpop.f32.mrb[0].mxu0
    %v302 = vadd.f32 %v92, %v301
    %303 = vmatprep.mubr.f32.mxu0 0.0
    %304 = vmatmul.mubr.f32.gmra.mrb[0].mxu0 %v168
    %v305 = vpop.f32.mrb[0].mxu0
    %v306 = vadd.f32 %v97, %v305
    %v307 = vpop.f32.mrb[0].mxu0
    %v308 = vadd.f32 %v97, %v307
    %309 = vmatprep.mubr.f32.mxu0 0.0
    %310 = vmatmul.mubr.f32.gmra.mrb[0].mxu0 %v171
    %v311 = vpop.f32.mrb[0].mxu0
    %v312 = vadd.f32 %v102, %v311
    %v313 = vpop.f32.mrb[0].mxu0
    %v314 = vadd.f32 %v102, %v313
    %315 = vmatprep.mubr.f32.mxu0 0.0
    %316 = vmatmul.mubr.f32.gmra.mrb[0].mxu0 %v174
    %v317 = vpop.f32.mrb[0].mxu0
    %v318 = vadd.f32 %v107, %v317
    %v319 = vpop.f32.mrb[0].mxu0
    %v320 = vadd.f32 %v107, %v319
    %321 = vmatprep.mubr.f32.mxu0 0.0
    %322 = vmatmul.mubr.f32.gmra.mrb[0].mxu0 %v177
    %v323 = vpop.f32.mrb[0].mxu0
    %v324 = vadd.f32 %v112, %v323
    %v325 = vpop.f32.mrb[0].mxu0
    %v326 = vadd.f32 %v112, %v325
    %327 = vmatprep.mubr.f32.mxu0 0.0
    %328 = vmatmul.mubr.f32.gmra.mrb[0].mxu0 %v180
    %v329 = vpop.f32.mrb[0].mxu0
    %v330 = vadd.f32 %v117, %v329
    %v331 = vpop.f32.mrb[0].mxu0
    %v332 = vadd.f32 %v117, %v331
    %333 = vmatprep.mubr.f32.mxu0 0.0
    %334 = vmatmul.mubr.f32.gmra.mrb[0].mxu0 %v183
    %v335 = vpop.f32.mrb[0].mxu0
    %v336 = vadd.f32 %v122, %v335
    %v337 = vpop.f32.mrb[0].mxu0
    %v338 = vadd.f32 %v122, %v337
    %339 = vmatprep.mubr.f32.mxu0 0.0
    %340 = vmatmul.mubr.f32.gmra.mrb[0].mxu0 %v186
    %v341 = vpop.f32.mrb[0].mxu0
    %v342 = vadd.f32 %v127, %v341
    %v343 = vpop.f32.mrb[0].mxu0
    %v344 = vadd.f32 %v127, %v343
    %345 = vmatprep.mubr.f32.mxu0 0.0
    %346 = vmatmul.mubr.f32.gmra.mrb[0].mxu0 %v189
    %v347 = vpop.f32.mrb[0].mxu0
    %v348 = vadd.f32 %v132, %v347
    %v349 = vpop.f32.mrb[0].mxu0
    %v350 = vadd.f32 %v132, %v349
    %351 = vdwg.mxu0
    %v352 = vmax.f32 %v258, 0.0
    %v353 = vmax.f32 %v260, 0.0
    %v354 = vmax.f32 %v264, 0.0
    %v355 = vmax.f32 %v266, 0.0
    %v356 = vmax.f32 %v270, 0.0
    %v357 = vmax.f32 %v272, 0.0
    %v358 = vmax.f32 %v276, 0.0
    %v359 = vmax.f32 %v278, 0.0
    %v360 = vmax.f32 %v282, 0.0
    %v361 = vmax.f32 %v284, 0.0
    %v362 = vmax.f32 %v288, 0.0
    %v363 = vmax.f32 %v290, 0.0
    %v364 = vmax.f32 %v294, 0.0
    %v365 = vmax.f32 %v296, 0.0
    %v366 = vmax.f32 %v300, 0.0
    %v367 = vmax.f32 %v302, 0.0
    %v368 = vmax.f32 %v306, 0.0
    %v369 = vmax.f32 %v308, 0.0
    %v370 = vmax.f32 %v312, 0.0
    %v371 = vmax.f32 %v314, 0.0
    %v372 = vmax.f32 %v318, 0.0
    %v373 = vmax.f32 %v320, 0.0
    %v374 = vmax.f32 %v324, 0.0
    %v375 = vmax.f32 %v326, 0.0
    %v376 = vmax.f32 %v330, 0.0
    %v377 = vmax.f32 %v332, 0.0
    %v378 = vmax.f32 %v336, 0.0
    %v379 = vmax.f32 %v338, 0.0
    %v380 = vmax.f32 %v342, 0.0
    %v381 = vmax.f32 %v344, 0.0
    %v382 = vmax.f32 %v348, 0.0
    %v383 = vmax.f32 %v350, 0.0
    %384 = vmatprep.subr.mxu0 %v353
    %385 = vmatpush1.msra.mxu0 %v352
    %386 = vmatprep.subr.mxu0 %v355
    %387 = vmatpush1.msra.mxu0 %v354
    %388 = vmatprep.subr.mxu0 %v357
    %389 = vmatpush1.msra.mxu0 %v356
    %390 = vmatprep.subr.mxu0 %v359
    %391 = vmatpush1.msra.mxu0 %v358
    %392 = vmatprep.subr.mxu0 %v361
    %393 = vmatpush1.msra.mxu0 %v360
    %394 = vmatprep.subr.mxu0 %v363
    %395 = vmatpush1.msra.mxu0 %v362
    %396 = vmatprep.subr.mxu0 %v365
    %397 = vmatpush1.msra.mxu0 %v364
    %398 = vmatprep.subr.mxu0 %v367
    %399 = vmatpush1.msra.mxu0 %v366
    %400 = vmatprep.subr.mxu0 %v369
    %401 = vmatpush1.msra.mxu0 %v368
    %402 = vmatprep.subr.mxu0 %v371
    %403 = vmatpush1.msra.mxu0 %v370
    %404 = vmatprep.subr.mxu0 %v373
    %405 = vmatpush1.msra.mxu0 %v372
    %406 = vmatprep.subr.mxu0 %v375
    %407 = vmatpush1.msra.mxu0 %v374
    %408 = vmatprep.subr.mxu0 %v377
    %409 = vmatpush1.msra.mxu0 %v376
    %410 = vmatprep.subr.mxu0 %v379
    %411 = vmatpush1.msra.mxu0 %v378
    %412 = vmatprep.subr.mxu0 %v381
    %413 = vmatpush1.msra.mxu0 %v380
    %414 = vmatprep.subr.mxu0 %v383
    %415 = vmatpush1.msra.mxu0 %v382
    %416 = vmatprep.subr.mxu0 0.0
    %417 = vmatpush1.msra.mxu0 0.0
    %418 = vmatprep.subr.mxu0 0.0
    %419 = vmatpush1.msra.mxu0 0.0
    %420 = vmatprep.subr.mxu0 0.0
    %421 = vmatpush1.msra.mxu0 0.0
    %422 = vmatprep.subr.mxu0 0.0
    %423 = vmatpush1.msra.mxu0 0.0
    %424 = vmatprep.subr.mxu0 0.0
    %425 = vmatpush1.msra.mxu0 0.0
    %426 = vmatprep.subr.mxu0 0.0
    %427 = vmatpush1.msra.mxu0 0.0
    %428 = vmatprep.subr.mxu0 0.0
    %429 = vmatpush1.msra.mxu0 0.0
    %430 = vmatprep.subr.mxu0 0.0
    %431 = vmatpush1.msra.mxu0 0.0
    %432 = vmatprep.subr.mxu0 0.0
    %433 = vmatpush1.msra.mxu0 0.0
    %434 = vmatprep.subr.mxu0 0.0
    %435 = vmatpush1.msra.mxu0 0.0
    %436 = vmatprep.subr.mxu0 0.0
    %437 = vmatpush1.msra.mxu0 0.0
    %438 = vmatprep.subr.mxu0 0.0
    %439 = vmatpush1.msra.mxu0 0.0
    %440 = vmatprep.subr.mxu0 0.0
    %441 = vmatpush1.msra.mxu0 0.0
    %442 = vmatprep.subr.mxu0 0.0
    %443 = vmatpush1.msra.mxu0 0.0
    %444 = vmatprep.subr.mxu0 0.0
    %445 = vmatpush1.msra.mxu0 0.0
    %446 = vmatprep.subr.mxu0 0.0
    %447 = vmatpush1.msra.mxu0 0.0
    %448 = vmatprep.mubr.f32.mxu0 0.0
    %449 = vmatmul.mubr.f32.gmra.mrb[0].mxu0 %v37
    %v450 = vpop.f32.mrb[0].mxu0
    %v451 = vadd.f32 %v138, %v450
    %v452 = vpop.f32.mrb[0].mxu0
    %v453 = vadd.f32 %v138, %v452
    %454 = vdwg.mxu0
    %v455 = vadd.f32 %v140, %v451
    %v456 = vadd.f32 %v141, %v453
    %457 = vst [vmem:[#allocation2] sm:$0xff] %v455
    %458 = vst [vmem:[#allocation2 + $0x8] sm:$0xff] %v456
    // Predicated region
    $region22: #{tpu_custom_call.1} parent=1 // pred_check
      _
    $region23: #{tpu_custom_call.1} parent=1 // pred_check_branch
      %460 = sbr.rel (0) target = $region25
    $region24: #{tpu_custom_call.1} parent=1 // pred_region
      %s462 = ssub.s32 256, 256
      %463 = vsyncadd [#allocation3], %s462
      %s465 = sshll.u32 [#allocation2], 4
      %s466 = int_to_ptr.vmem [resolvable:$true] %s465
      %468 = dma.vmem_to_hbm [thread:$0]  %s466, 256, %s5, [#allocation3]
    $region25: #{tpu_custom_call.1} parent=1 // pred_fallthru
      _
    // Predicated region
    $region26: #{tpu_custom_call.1} parent=1 // pred_check
      _
    $region27: #{tpu_custom_call.1} parent=1 // pred_check_branch
      %470 = sbr.rel (0) target = $region29
    $region28: #{tpu_custom_call.1} parent=1 // pred_region
      %471 = dma.done [#allocation3], 256
    $region29: #{tpu_custom_call.1} parent=1 // pred_fallthru
      _
    %472 = vsyncpa [#allocation3], 1

</llo_original>
